<compile_context>
chip_gen: v7x
topology: tpu7x:2x2x1
jax: 0.10.0
libtpu: 0.0.40
codegen_flags: <defaults>
</compile_context>

<pallas_src>
import jax
import jax.numpy as jnp
from jax.experimental import pallas as pl
from jax.experimental.pallas import tpu as pltpu


def _round_up(x, m):
    return ((x + m - 1) // m) * m


def _vmem_capacity_bytes():
    """Physical VMEM per TensorCore; conservative fallback if query fails."""
    try:
        info = pltpu.get_tpu_info()
        cap = getattr(info, "vmem_capacity_bytes", None)
        if cap:
            return int(cap)
    except Exception:
        pass
    return 64 * 1024 * 1024  # v7x-sized fallback (safe on every generation)


def _select_tiles(M, K, C, x_item, w_item, out_item, budget):
    """Pick (tm, tn, Mp, Cp) so double-buffered tiles stay inside `budget`."""
    # Lane-dense class dim (multiple of 128 -> unmasked vector stores); keep the
    # whole (tiny) SVM head resident unless it would blow half the budget.
    cp128 = _round_up(C, 128)
    tn_cap = max(128, ((budget // 2) // max(1, 2 * K * w_item)) // 128 * 128)
    tn = min(cp128, tn_cap)
    Cp = _round_up(C, tn)

    # Row tile: as big as the budget allows (amortize per-grid-step overhead),
    # but at least 2 row blocks so the parallel axis can use both v7x cores.
    Mp8 = _round_up(M, 8)
    per_row = 2 * K * x_item + 2 * tn * out_item          # x + out, double-buffered
    w_bytes = 2 * K * tn * w_item                          # resident W buffers
    tm_cap = max(8, ((budget - w_bytes) // max(1, per_row)) // 8 * 8)
    tm = min(tm_cap, Mp8)
    if Mp8 >= 16:
        tm = min(tm, _round_up(pl.cdiv(Mp8, 2), 8))
    Mp = _round_up(M, tm)
    return tm, tn, Mp, Cp


def _svm_matmul_kernel(x_ref, w_ref, o_ref):
    """One (tm, tn) output tile; full K reduction inside the block."""
    o_ref[...] = jnp.dot(
        x_ref[...], w_ref[...], preferred_element_type=jnp.float32
    ).astype(o_ref.dtype)


_TINY_MACS = 64 * 1024  # below this, a single fused XLA dot beats kernel overhead


def svm_forward(mat_feats, W):
    """Pallas SVMClassifier forward: (mat_feats @ W, W, mat_feats)."""
    M, K = mat_feats.shape
    K2, C = W.shape
    assert K == K2

    compute_dtype = jnp.promote_types(mat_feats.dtype, W.dtype)
    out_dtype = compute_dtype
    x = mat_feats if mat_feats.dtype == compute_dtype else mat_feats.astype(compute_dtype)
    w = W if W.dtype == compute_dtype else W.astype(compute_dtype)

    # Fast path: tiny problems (pad + pallas_call launch + slice would dominate).
    if M * K * C < _TINY_MACS:
        output = jnp.dot(x, w, preferred_element_type=jnp.float32).astype(out_dtype)
        return output, W, mat_feats

    x_item = jnp.dtype(compute_dtype).itemsize
    w_item = x_item
    out_item = jnp.dtype(out_dtype).itemsize

    vmem_cap = _vmem_capacity_bytes()
    vmem_limit = (vmem_cap * 3) // 4          # headroom below physical VMEM
    tile_budget = int(vmem_cap * 0.4)         # leave room for compiler scratch

    tm, tn, Mp, Cp = _select_tiles(M, K, C, x_item, w_item, out_item, tile_budget)

    # Pad only what is strictly needed: W (tiny) along C; mat_feats along M only
    # if the row tiling requires it. K is never padded (full-dim blocks).
    xp = x if Mp == M else jnp.pad(x, ((0, Mp - M), (0, 0)))
    wp = w if Cp == C else jnp.pad(w, ((0, 0), (0, Cp - C)))

    grid = (Mp // tm, Cp // tn)
    flops = 2 * Mp * K * Cp
    bytes_accessed = Mp * K * x_item + K * Cp * w_item + Mp * Cp * out_item

    y = pl.pallas_call(
        _svm_matmul_kernel,
        out_shape=jax.ShapeDtypeStruct((Mp, Cp), out_dtype),
        grid=grid,
        in_specs=[
            pl.BlockSpec((tm, K), lambda i, j: (i, 0)),   # x streamed once per row block
            pl.BlockSpec((K, tn), lambda i, j: (0, j)),   # W resident (tiny)
        ],
        out_specs=pl.BlockSpec((tm, tn), lambda i, j: (i, j)),
        compiler_params=pltpu.CompilerParams(
            dimension_semantics=("parallel", "parallel"),
            vmem_limit_bytes=vmem_limit,
        ),
        cost_estimate=pl.CostEstimate(
            flops=flops, transcendentals=0, bytes_accessed=bytes_accessed
        ),
    )(xp, wp)

    output = y if (Mp == M and Cp == C) else y[:M, :C]
    # Match the PyTorch module's return signature: (output, W, mat_feats).
    return output, W, mat_feats


if __name__ == "__main__":
    key = jax.random.PRNGKey(0)
    k1, k2, k3, k4 = jax.random.split(key, 4)

    # --- Pallas path: N=256 feature rows, hidden_dims=128, num_classes=8, bf16 ---
    N, H, C = 256, 128, 8
    mat_feats = jax.random.normal(k1, (N, H), jnp.float32).astype(jnp.bfloat16)
    W = (0.1 * jax.random.normal(k2, (H, C), jnp.float32)).astype(jnp.bfloat16)

    output, W_out, feats_out = svm_forward(mat_feats, W)
    jax.block_until_ready((output, W_out, feats_out))

    ref = (mat_feats.astype(jnp.float32) @ W.astype(jnp.float32)).astype(output.dtype)
    assert output.shape == (N, C)
    assert output.dtype == mat_feats.dtype
    assert jnp.allclose(output.astype(jnp.float32), ref.astype(jnp.float32),
                        atol=5e-2, rtol=5e-2)
    assert jnp.array_equal(W_out, W)
    assert jnp.array_equal(feats_out, mat_feats)

    # --- Tiny-shape fast path (bypasses Pallas): N=64, hidden=32, classes=4, f32 ---
    N2, H2, C2 = 64, 32, 4
    x2 = jax.random.normal(k3, (N2, H2), jnp.float32)
    W2 = 0.1 * jax.random.normal(k4, (H2, C2), jnp.float32)
    out2, W2_out, x2_out = svm_forward(x2, W2)
    jax.block_until_ready(out2)
    assert out2.shape == (N2, C2)
    assert jnp.allclose(out2, x2 @ W2, atol=1e-5, rtol=1e-5)
    assert jnp.array_equal(W2_out, W2) and jnp.array_equal(x2_out, x2)

    print("KERNEL_OK")
</pallas_src>

<mosaic_0001>
module attributes {stable_mosaic.version = 11 : i64} {
  func.func @_svm_matmul_kernel(%arg0: i32, %arg1: i32, %arg2: memref<128x128xbf16, #tpu.memory_space<vmem>>, %arg3: memref<128x128xbf16, #tpu.memory_space<vmem>>, %arg4: memref<128x128xbf16, #tpu.memory_space<vmem>>) attributes {dimension_semantics = [#tpu.dimension_semantics<parallel>, #tpu.dimension_semantics<parallel>], iteration_bounds = array<i64: 2, 1>, scalar_prefetch = 0 : i64, scratch_operands = 0 : i64, tpu.core_type = #tpu.core_type<tc>, window_params = [{transform_indices = @transform_0, window_bounds = array<i64: 128, 128>}, {transform_indices = @transform_1, window_bounds = array<i64: 128, 128>}, {transform_indices = @transform_2, window_bounds = array<i64: 128, 128>}]} {
    %c0 = arith.constant 0 : index
    %c0_0 = arith.constant 0 : index
    %0 = vector.load %arg2[%c0, %c0_0] : memref<128x128xbf16, #tpu.memory_space<vmem>>, vector<128x128xbf16>
    %c0_1 = arith.constant 0 : index
    %c0_2 = arith.constant 0 : index
    %1 = vector.load %arg3[%c0_1, %c0_2] : memref<128x128xbf16, #tpu.memory_space<vmem>>, vector<128x128xbf16>
    %cst = arith.constant dense<0.000000e+00> : vector<128x128xf32>
    %2 = tpu.matmul %0, %1, %cst {dimension_numbers = #tpu.dot_dimension_numbers<[1], [0], [0], [1], [0, 0, 1, 1], [], []>} : vector<128x128xbf16>, vector<128x128xbf16>, vector<128x128xf32> -> vector<128x128xf32>
    %3 = arith.truncf %2 : vector<128x128xf32> to vector<128x128xbf16>
    %c0_3 = arith.constant 0 : index
    %c0_4 = arith.constant 0 : index
    %4 = vector.load %arg4[%c0_3, %c0_4] : memref<128x128xbf16, #tpu.memory_space<vmem>>, vector<128x128xbf16>
    tpu.vector_store %arg4[%c0_3, %c0_4], %3 {strides = array<i32>} : memref<128x128xbf16, #tpu.memory_space<vmem>>, vector<128x128xbf16>,
    return
  }
  func.func @transform_0(%arg0: i32, %arg1: i32) -> (i32, i32) {
    %c0_i32 = arith.constant 0 : i32
    %c0_i32_0 = arith.constant 0 : i32
    return %arg0, %c0_i32 : i32, i32
  }
  func.func @transform_1(%arg0: i32, %arg1: i32) -> (i32, i32) {
    %c0_i32 = arith.constant 0 : i32
    %c0_i32_0 = arith.constant 0 : i32
    return %c0_i32, %arg1 : i32, i32
  }
  func.func @transform_2(%arg0: i32, %arg1: i32) -> (i32, i32) {
    %c0_i32 = arith.constant 0 : i32
    return %arg0, %arg1 : i32, i32
  }
}

</mosaic_0001>

<llo_original>
// kernel: tpu_custom_call.1
$region0: #{tpu_custom_call.1}
  #allocation0 [shape = 'u32[]', space=smem, size = 0x4, offset = 0x4, fixed_abs, tag = 'smem constant byte address 0x4 - core index']
  #allocation1 [shape = 'u32[144,128]{1,0:T(1,128)}', space=vmem, size = 0x12000, scoped, tag = 'internal scratch']
  %s0 = inlined_call_operand.hbm [shape: bf16[256,128], index: 0, kind: input, shape index: {}]
  %s1 = inlined_call_operand.hbm [shape: bf16[128,128], index: 1, kind: input, shape index: {}]
  %s2 = inlined_call_operand.hbm [shape: bf16[256,128], index: 2, kind: output, shape index: {}]
  %s3 = sld [smem:[#allocation0]]
  $region49: #{tpu_custom_call.1} parent=0
    _
  %s5 = ssub.s32 1, %s3
  %s6 = scalar_select 0, %s5, %s3
  $region1: #{tpu_custom_call.1} parent=0
    #allocation2 [shape = 'u8[65536]{0}', space=vmem, size = 0x10000, scoped, tag = 'input window, operand 0']
    #allocation3 [shape = 's32[2]{0}', space=sflag, size = 0x8, scoped, tag = 'scoped memory for tpu_custom_call.1']
    #allocation4 [shape = 's32[2]{0}', space=sflag, size = 0x8, scoped, tag = 'scoped memory for tpu_custom_call.1']
    #allocation5 [shape = 'u8[32768]{0}', space=vmem, size = 0x8000, scoped, tag = 'input window, operand 1, single buffered']
    #allocation6 [shape = 's32[1]{0}', space=sflag, size = 0x4, scoped, tag = 'scoped memory for tpu_custom_call.1']
    #allocation7 [shape = 'u8[65536]{0}', space=vmem, size = 0x10000, scoped, tag = 'output window, operand 0']
    %7 = vsyncpa [#allocation3], 0
    %s8 = scalar_lea.sflag [#allocation3], 1
    %9 = vsyncpa %s8, 0
    %10 = vsyncpa [#allocation6], 0
    %11 = vsyncpa [#allocation4], 0
    %s12 = scalar_lea.sflag [#allocation4], 1
    %13 = vsyncpa %s12, 0
    loop: start=0, step=1, limit=4
    $region2: #{tpu_custom_call.1} parent=1 // loop_pre_header
      _
    $region3: #{tpu_custom_call.1} parent=1 // loop_header
      %s15 = sphi 0, %s19
      %p16 = scmp.ge.s32.totalorder %s15, 4
      %s22 = sphi 0, %s34
      %s23 = sphi 0, %s30
      %s24 = sphi 0, %s22
      %s25 = sphi 0, %s23
      %s26 = sphi 0, %s24
      %s27 = sphi 0, %s25
      %s37 = sphi 0, %s39
      %s40 = sphi 0, %s37
      %s41 = sphi 0, %s40
      %s57 = sphi 0, %s41
      %s63 = sphi 0, %s65
      %s66 = sphi 0, %s63
      %s67 = sphi 0, %s66
      %s83 = sphi 0, %s67
      %s91 = sphi 0, %s93
      %s94 = sphi 0, %s91
      %s95 = sphi 0, %s94
      %s111 = sphi 0, %s95
    $region4: #{tpu_custom_call.1} parent=1 // loop_header_branch
      %18 = sbr.rel (%p16) target = $region8
    $region5: #{tpu_custom_call.1} parent=1 // loop_body
      %s20 = ssub.s32 %s15, 1
      %s21 = ssub.s32 %s15, 2
      %s28 = sadd.s32 1, %s23
      %p29 = scmp.ge.s32.totalorder %s28, 1
      %s30 = scalar_select %p29, 0, %s28
      %s31 = sadd.s32 1, %s22
      %s32 = scalar_select %p29, %s31, %s22
      %p33 = scmp.ge.s32.totalorder %s32, 2
      %s34 = scalar_select %p33, 0, %s32
      %s35 = ssub.s32 %s22, %s34
      %p36 = scmp.eq.s32.totalorder %s35, 0
      %s38 = sadd.s32 %s37, 1
      %s39 = scalar_select %p36, %s37, %s38
      %p42 = pneg %p36
      %p43 = scmp.eq.s32.totalorder %s15, 1
      %p44 = por %p42, %p43
      %p45 = scmp.ne.s32.totalorder %s37, %s40
      %p46 = scmp.eq.s32.totalorder %s15, 0
      %p47 = por %p45, %p46
      %p48 = scmp.ne.s32.totalorder %s37, %s40
      %p49 = scmp.eq.s32.totalorder %s20, 1
      %p50 = por %p48, %p49
      %p51 = scmp.ne.s32.totalorder %s40, %s41
      %p52 = scmp.eq.s32.totalorder %s20, 0
      %p53 = por %p51, %p52
      %p54 = scmp.ne.s32.totalorder %s40, %s41
      %p55 = scmp.eq.s32.totalorder %s21, 1
      %p56 = por %p54, %p55
      %p58 = scmp.ne.s32.totalorder %s41, %s57
      %p59 = scmp.eq.s32.totalorder %s21, 0
      %p60 = por %p58, %p59
      %s61 = ssub.s32 %s23, %s30
      %p62 = scmp.eq.s32.totalorder %s61, 0
      %s64 = sadd.s32 %s63, 1
      %s65 = scalar_select %p62, %s63, %s64
      %p68 = pneg %p62
      %p69 = scmp.eq.s32.totalorder %s15, 1
      %p70 = por %p68, %p69
      %p71 = scmp.ne.s32.totalorder %s63, %s66
      %p72 = scmp.eq.s32.totalorder %s15, 0
      %p73 = por %p71, %p72
      %p74 = scmp.ne.s32.totalorder %s63, %s66
      %p75 = scmp.eq.s32.totalorder %s20, 1
      %p76 = por %p74, %p75
      %p77 = scmp.ne.s32.totalorder %s66, %s67
      %p78 = scmp.eq.s32.totalorder %s20, 0
      %p79 = por %p77, %p78
      %p80 = scmp.ne.s32.totalorder %s66, %s67
      %p81 = scmp.eq.s32.totalorder %s21, 1
      %p82 = por %p80, %p81
      %p84 = scmp.ne.s32.totalorder %s67, %s83
      %p85 = scmp.eq.s32.totalorder %s21, 0
      %p86 = por %p84, %p85
      %s87 = ssub.s32 %s22, %s34
      %s88 = ssub.s32 %s23, %s30
      %s89 = sor.u32 %s87, %s88
      %p90 = scmp.eq.s32.totalorder %s89, 0
      %s92 = sadd.s32 %s91, 1
      %s93 = scalar_select %p90, %s91, %s92
      %p96 = pneg %p90
      %p97 = scmp.eq.s32.totalorder %s15, 1
      %p98 = por %p96, %p97
      %p99 = scmp.ne.s32.totalorder %s91, %s94
      %p100 = scmp.eq.s32.totalorder %s15, 0
      %p101 = por %p99, %p100
      %p102 = scmp.ne.s32.totalorder %s91, %s94
      %p103 = scmp.eq.s32.totalorder %s20, 1
      %p104 = por %p102, %p103
      %p105 = scmp.ne.s32.totalorder %s94, %s95
      %p106 = scmp.eq.s32.totalorder %s20, 0
      %p107 = por %p105, %p106
      %p108 = scmp.ne.s32.totalorder %s94, %s95
      %p109 = scmp.eq.s32.totalorder %s21, 1
      %p110 = por %p108, %p109
      %p112 = scmp.ne.s32.totalorder %s95, %s111
      %p113 = scmp.eq.s32.totalorder %s21, 0
      %p114 = por %p112, %p113
      %p115 = scmp.le.s32.totalorder 1, %s15
      %p116 = scmp.lt.s32.totalorder %s15, 3
      %p117 = pnand %p115, %p116
      %p118 = pneg %p117
      // Predicated region
      $region9: #{tpu_custom_call.1} parent=5 // pred_check
        _
      $region10: #{tpu_custom_call.1} parent=5 // pred_check_branch
        %120 = sbr.rel (%p117) target = $region12
      $region11: #{tpu_custom_call.1} parent=5 // pred_region
        %s121 = ssub.s32 %s15, 1
        // Predicated region
        $region13: #{tpu_custom_call.1} parent=11 // pred_check
          %p122 = pneg %p79
        $region14: #{tpu_custom_call.1} parent=11 // pred_check_branch
          %124 = sbr.rel (%p122) target = $region16
        $region15: #{tpu_custom_call.1} parent=11 // pred_region
          %s126 = ssub.s32 1024, 1024
          %127 = vsyncadd [#allocation6], %s126
          %s128 = smul.addr %s25, 64
          %s129 = scalar_lea.hbm %s1, %s128
          %s130 = sshll.u32 [#allocation5], 4
          %s131 = int_to_ptr.vmem [resolvable:$true] %s130
          %136 = dma.hbm_to_vmem [thread:$0]  %s129, 1024, %s131, [#allocation6], 64, 64, 4
        $region16: #{tpu_custom_call.1} parent=11 // pred_fallthru
          _
      $region12: #{tpu_custom_call.1} parent=5 // pred_fallthru
        _
      %p137 = scmp.lt.s32.totalorder %s15, 2
      // Predicated region
      $region17: #{tpu_custom_call.1} parent=5 // pred_check
        %p138 = pneg %p137
      $region18: #{tpu_custom_call.1} parent=5 // pred_check_branch
        %140 = sbr.rel (%p138) target = $region20
      $region19: #{tpu_custom_call.1} parent=5 // pred_region
        // Predicated region
        $region21: #{tpu_custom_call.1} parent=19 // pred_check
          %p141 = pneg %p47
        $region22: #{tpu_custom_call.1} parent=19 // pred_check_branch
          %143 = sbr.rel (%p141) target = $region24
        $region23: #{tpu_custom_call.1} parent=19 // pred_region
          %s144 = sand.u32 %s37, 1
          %s145 = scalar_lea.sflag [#allocation3], %s144
          %s146 = sand.u32 %s37, 1
          %s147 = smul.addr %s146, 64
          %s148 = scalar_lea.vmem [#allocation2], %s147
          %s149 = smul.u32 16, %s22
          %s151 = ssub.s32 1024, 1024
          %152 = vsyncadd %s145, %s151
          %s153 = smul.addr %s149, 64
          %s154 = scalar_lea.hbm %s0, %s153
          %s155 = sshll.u32 %s148, 4
          %s156 = int_to_ptr.vmem [resolvable:$true] %s155
          %161 = dma.hbm_to_vmem [thread:$0]  %s154, 1024, %s156, %s145, 64, 64, 4
        $region24: #{tpu_custom_call.1} parent=19 // pred_fallthru
          _
      $region20: #{tpu_custom_call.1} parent=5 // pred_fallthru
        _
      %p162 = scmp.le.s32.totalorder 1, %s15
      %p163 = scmp.lt.s32.totalorder %s15, 3
      %p164 = pnand %p162, %p163
      %p165 = pneg %p164
      // Predicated region
      $region25: #{tpu_custom_call.1} parent=5 // pred_check
        _
      $region26: #{tpu_custom_call.1} parent=5 // pred_check_branch
        %167 = sbr.rel (%p164) target = $region28
      $region27: #{tpu_custom_call.1} parent=5 // pred_region
        %s168 = ssub.s32 %s15, 1
        %s169 = sand.u32 %s40, 1
        %s170 = scalar_lea.sflag [#allocation3], %s169
        %s171 = sand.u32 %s40, 1
        %s172 = smul.addr %s171, 64
        %s173 = scalar_lea.vmem [#allocation2], %s172
        // Predicated region
        $region29: #{tpu_custom_call.1} parent=27 // pred_check
          %p174 = pneg %p53
        $region30: #{tpu_custom_call.1} parent=27 // pred_check_branch
          %176 = sbr.rel (%p174) target = $region32
        $region31: #{tpu_custom_call.1} parent=27 // pred_region
          %177 = dma.done %s170, 1024
        $region32: #{tpu_custom_call.1} parent=27 // pred_fallthru
          _
        // Predicated region
        $region33: #{tpu_custom_call.1} parent=27 // pred_check
          %p178 = pneg %p79
        $region34: #{tpu_custom_call.1} parent=27 // pred_check_branch
          %180 = sbr.rel (%p178) target = $region36
        $region35: #{tpu_custom_call.1} parent=27 // pred_region
          %181 = dma.done [#allocation6], 1024
        $region36: #{tpu_custom_call.1} parent=27 // pred_fallthru
          _
        %s182 = sand.u32 %s40, 1
        %s183 = scalar_lea.sflag [#allocation3], %s182
        %s184 = sand.u32 %s40, 1
        %s185 = smul.addr %s184, 64
        %s186 = scalar_lea.vmem [#allocation2], %s185
        %p187 = pneg %p53
        %p188 = pneg %p50
        %p189 = pneg %p79
        %p190 = pneg %p76
        %p191 = pneg %p107
        %p192 = pneg %p104
        %s193 = sand.u32 %s94, 1
        %s194 = scalar_lea.sflag [#allocation4], %s193
        %s195 = sand.u32 %s94, 1
        %s196 = smul.addr %s195, 64
        %s197 = scalar_lea.vmem [#allocation7], %s196
        %s198 = smul.u32 16, %s24
        %s199 = smul.u32 16, %s24
        %v201 = vld [vmem:[%s173] sm:$0xf]
        %v202 = vld [vmem:[%s173 + $0x4] sm:$0xf]
        %v203 = vld [vmem:[%s173 + $0x8] sm:$0xf]
        %v204 = vld [vmem:[%s173 + $0xc] sm:$0xf]
        %v205 = vld [vmem:[%s173 + $0x10] sm:$0xf]
        %v206 = vld [vmem:[%s173 + $0x14] sm:$0xf]
        %v207 = vld [vmem:[%s173 + $0x18] sm:$0xf]
        %v208 = vld [vmem:[%s173 + $0x1c] sm:$0xf]
        %v209 = vld [vmem:[%s173 + $0x20] sm:$0xf]
        %v210 = vld [vmem:[%s173 + $0x24] sm:$0xf]
        %v211 = vld [vmem:[%s173 + $0x28] sm:$0xf]
        %v212 = vld [vmem:[%s173 + $0x2c] sm:$0xf]
        %v213 = vld [vmem:[%s173 + $0x30] sm:$0xf]
        %v214 = vld [vmem:[%s173 + $0x34] sm:$0xf]
        %v215 = vld [vmem:[%s173 + $0x38] sm:$0xf]
        %v216 = vld [vmem:[%s173 + $0x3c] sm:$0xf]
        %v217 = vld [vmem:[#allocation5] sm:$0xf]
        %v218 = vld [vmem:[#allocation5 + $0x4] sm:$0xf]
        %v219 = vld [vmem:[#allocation5 + $0x8] sm:$0xf]
        %v220 = vld [vmem:[#allocation5 + $0xc] sm:$0xf]
        %v221 = vld [vmem:[#allocation5 + $0x10] sm:$0xf]
        %v222 = vld [vmem:[#allocation5 + $0x14] sm:$0xf]
        %v223 = vld [vmem:[#allocation5 + $0x18] sm:$0xf]
        %v224 = vld [vmem:[#allocation5 + $0x1c] sm:$0xf]
        %v225 = vld [vmem:[#allocation5 + $0x20] sm:$0xf]
        %v226 = vld [vmem:[#allocation5 + $0x24] sm:$0xf]
        %v227 = vld [vmem:[#allocation5 + $0x28] sm:$0xf]
        %v228 = vld [vmem:[#allocation5 + $0x2c] sm:$0xf]
        %v229 = vld [vmem:[#allocation5 + $0x30] sm:$0xf]
        %v230 = vld [vmem:[#allocation5 + $0x34] sm:$0xf]
        %v231 = vld [vmem:[#allocation5 + $0x38] sm:$0xf]
        %v232 = vld [vmem:[#allocation5 + $0x3c] sm:$0xf]
        %v249 = vunpack.c.l.b16 %v201
        %v250 = vunpack.c.l.b16 %v202
        %v251 = vunpack.c.l.b16 %v203
        %v252 = vunpack.c.l.b16 %v204
        %v253 = vunpack.c.l.b16 %v205
        %v254 = vunpack.c.l.b16 %v206
        %v255 = vunpack.c.l.b16 %v207
        %v256 = vunpack.c.l.b16 %v208
        %v257 = vunpack.c.l.b16 %v209
        %v258 = vunpack.c.l.b16 %v210
        %v259 = vunpack.c.l.b16 %v211
        %v260 = vunpack.c.l.b16 %v212
        %v261 = vunpack.c.l.b16 %v213
        %v262 = vunpack.c.l.b16 %v214
        %v263 = vunpack.c.l.b16 %v215
        %v264 = vunpack.c.l.b16 %v216
        %v265 = vpack.c.b16 %v250, %v249
        %v266 = vpack.c.b16 %v252, %v251
        %v267 = vpack.c.b16 %v254, %v253
        %v268 = vpack.c.b16 %v256, %v255
        %v269 = vpack.c.b16 %v258, %v257
        %v270 = vpack.c.b16 %v260, %v259
        %v271 = vpack.c.b16 %v262, %v261
        %v272 = vpack.c.b16 %v264, %v263
        %v297 = vunpack.c.l.b16 %v217
        %v298 = vunpack.c.l.b16 %v218
        %v299 = vunpack.c.l.b16 %v219
        %v300 = vunpack.c.l.b16 %v220
        %v301 = vunpack.c.l.b16 %v221
        %v302 = vunpack.c.l.b16 %v222
        %v303 = vunpack.c.l.b16 %v223
        %v304 = vunpack.c.l.b16 %v224
        %v305 = vunpack.c.l.b16 %v225
        %v306 = vunpack.c.l.b16 %v226
        %v307 = vunpack.c.l.b16 %v227
        %v308 = vunpack.c.l.b16 %v228
        %v309 = vunpack.c.l.b16 %v229
        %v310 = vunpack.c.l.b16 %v230
        %v311 = vunpack.c.l.b16 %v231
        %v312 = vunpack.c.l.b16 %v232
        %v313 = vpack.c.b16 %v298, %v297
        %v314 = vpack.c.b16 %v300, %v299
        %v315 = vpack.c.b16 %v302, %v301
        %v316 = vpack.c.b16 %v304, %v303
        %v317 = vpack.c.b16 %v306, %v305
        %v318 = vpack.c.b16 %v308, %v307
        %v319 = vpack.c.b16 %v310, %v309
        %v320 = vpack.c.b16 %v312, %v311
        %329 = vmatprep.subr.bf16.mxu0 0
        %330 = vmatpush1.bf16.msra.mxu0 %v313
        %331 = vmatprep.subr.bf16.mxu0 0
        %332 = vmatpush1.bf16.msra.mxu0 %v314
        %333 = vmatprep.subr.bf16.mxu0 0
        %334 = vmatpush1.bf16.msra.mxu0 %v315
        %335 = vmatprep.subr.bf16.mxu0 0
        %336 = vmatpush1.bf16.msra.mxu0 %v316
        %337 = vmatprep.subr.bf16.mxu0 0
        %338 = vmatpush1.bf16.msra.mxu0 %v317
        %339 = vmatprep.subr.bf16.mxu0 0
        %340 = vmatpush1.bf16.msra.mxu0 %v318
        %341 = vmatprep.subr.bf16.mxu0 0
        %342 = vmatpush1.bf16.msra.mxu0 %v319
        %343 = vmatprep.subr.bf16.mxu0 0
        %344 = vmatpush1.bf16.msra.mxu0 %v320
        %345 = vmatprep.subr.bf16.mxu0 0
        %346 = vmatpush1.bf16.msra.mxu0 0
        %347 = vmatprep.subr.bf16.mxu0 0
        %348 = vmatpush1.bf16.msra.mxu0 0
        %349 = vmatprep.subr.bf16.mxu0 0
        %350 = vmatpush1.bf16.msra.mxu0 0
        %351 = vmatprep.subr.bf16.mxu0 0
        %352 = vmatpush1.bf16.msra.mxu0 0
        %353 = vmatprep.subr.bf16.mxu0 0
        %354 = vmatpush1.bf16.msra.mxu0 0
        %355 = vmatprep.subr.bf16.mxu0 0
        %356 = vmatpush1.bf16.msra.mxu0 0
        %357 = vmatprep.subr.bf16.mxu0 0
        %358 = vmatpush1.bf16.msra.mxu0 0
        %359 = vmatprep.subr.bf16.mxu0 0
        %360 = vmatpush1.bf16.msra.mxu0 0
        %361 = vmatprep.mubr.bf16.mxu0 0
        %362 = vmatmul.mubr.bf16.gmra.mrb[0].mxu0 %v265
        %v363 = vpop.f32.mrb[0].mxu0
        %v364 = vadd.f32 0.0, %v363
        %v365 = vpop.f32.mrb[0].mxu0
        %v366 = vpop.f32.mrb[0].mxu0
        %v367 = vadd.f32 0.0, %v366
        %v368 = vpop.f32.mrb[0].mxu0
        %369 = vmatprep.mubr.bf16.mxu0 0
        %370 = vmatmul.mubr.bf16.gmra.mrb[0].mxu0 %v266
        %v371 = vpop.f32.mrb[0].mxu0
        %v372 = vadd.f32 0.0, %v371
        %v373 = vpop.f32.mrb[0].mxu0
        %v374 = vpop.f32.mrb[0].mxu0
        %v375 = vadd.f32 0.0, %v374
        %v376 = vpop.f32.mrb[0].mxu0
        %377 = vmatprep.mubr.bf16.mxu0 0
        %378 = vmatmul.mubr.bf16.gmra.mrb[0].mxu0 %v267
        %v379 = vpop.f32.mrb[0].mxu0
        %v380 = vadd.f32 0.0, %v379
        %v381 = vpop.f32.mrb[0].mxu0
        %v382 = vpop.f32.mrb[0].mxu0
        %v383 = vadd.f32 0.0, %v382
        %v384 = vpop.f32.mrb[0].mxu0
        %385 = vmatprep.mubr.bf16.mxu0 0
        %386 = vmatmul.mubr.bf16.gmra.mrb[0].mxu0 %v268
        %v387 = vpop.f32.mrb[0].mxu0
        %v388 = vadd.f32 0.0, %v387
        %v389 = vpop.f32.mrb[0].mxu0
        %v390 = vpop.f32.mrb[0].mxu0
        %v391 = vadd.f32 0.0, %v390
        %v392 = vpop.f32.mrb[0].mxu0
        %393 = vmatprep.mubr.bf16.mxu0 0
        %394 = vmatmul.mubr.bf16.gmra.mrb[0].mxu0 %v269
        %v395 = vpop.f32.mrb[0].mxu0
        %v396 = vadd.f32 0.0, %v395
        %v397 = vpop.f32.mrb[0].mxu0
        %v398 = vpop.f32.mrb[0].mxu0
        %v399 = vadd.f32 0.0, %v398
        %v400 = vpop.f32.mrb[0].mxu0
        %401 = vmatprep.mubr.bf16.mxu0 0
        %402 = vmatmul.mubr.bf16.gmra.mrb[0].mxu0 %v270
        %v403 = vpop.f32.mrb[0].mxu0
        %v404 = vadd.f32 0.0, %v403
        %v405 = vpop.f32.mrb[0].mxu0
        %v406 = vpop.f32.mrb[0].mxu0
        %v407 = vadd.f32 0.0, %v406
        %v408 = vpop.f32.mrb[0].mxu0
        %409 = vmatprep.mubr.bf16.mxu0 0
        %410 = vmatmul.mubr.bf16.gmra.mrb[0].mxu0 %v271
        %v411 = vpop.f32.mrb[0].mxu0
        %v412 = vadd.f32 0.0, %v411
        %v413 = vpop.f32.mrb[0].mxu0
        %v414 = vpop.f32.mrb[0].mxu0
        %v415 = vadd.f32 0.0, %v414
        %v416 = vpop.f32.mrb[0].mxu0
        %417 = vmatprep.mubr.bf16.mxu0 0
        %418 = vmatmul.mubr.bf16.gmra.mrb[0].mxu0 %v272
        %v419 = vpop.f32.mrb[0].mxu0
        %v420 = vadd.f32 0.0, %v419
        %v421 = vpop.f32.mrb[0].mxu0
        %v422 = vpop.f32.mrb[0].mxu0
        %v423 = vadd.f32 0.0, %v422
        %v424 = vpop.f32.mrb[0].mxu0
        %425 = vdwg.mxu0
        %v426 = vpack.c.bf16 %v367, %v364
        %v427 = vpack.c.bf16 %v375, %v372
        %v428 = vpack.c.bf16 %v383, %v380
        %v429 = vpack.c.bf16 %v391, %v388
        %v430 = vpack.c.bf16 %v399, %v396
        %v431 = vpack.c.bf16 %v407, %v404
        %v432 = vpack.c.bf16 %v415, %v412
        %v433 = vpack.c.bf16 %v423, %v420
        %v442 = vunpack.c.l.b16 %v426
        %v443 = vunpack.c.h.b16 %v426
        %v444 = vunpack.c.l.b16 %v427
        %v445 = vunpack.c.h.b16 %v427
        %v446 = vunpack.c.l.b16 %v428
        %v447 = vunpack.c.h.b16 %v428
        %v448 = vunpack.c.l.b16 %v429
        %v449 = vunpack.c.h.b16 %v429
        %v450 = vunpack.c.l.b16 %v430
        %v451 = vunpack.c.h.b16 %v430
        %v452 = vunpack.c.l.b16 %v431
        %v453 = vunpack.c.h.b16 %v431
        %v454 = vunpack.c.l.b16 %v432
        %v455 = vunpack.c.h.b16 %v432
        %v456 = vunpack.c.l.b16 %v433
        %v457 = vunpack.c.h.b16 %v433
        %v458 = vpack.c.b16 %v442, %v442
        %v459 = vpack.c.b16 %v443, %v443
        %v460 = vpack.c.b16 %v444, %v444
        %v461 = vpack.c.b16 %v445, %v445
        %v462 = vpack.c.b16 %v446, %v446
        %v463 = vpack.c.b16 %v447, %v447
        %v464 = vpack.c.b16 %v448, %v448
        %v465 = vpack.c.b16 %v449, %v449
        %v466 = vpack.c.b16 %v450, %v450
        %v467 = vpack.c.b16 %v451, %v451
        %v468 = vpack.c.b16 %v452, %v452
        %v469 = vpack.c.b16 %v453, %v453
        %v470 = vpack.c.b16 %v454, %v454
        %v471 = vpack.c.b16 %v455, %v455
        %v472 = vpack.c.b16 %v456, %v456
        %v473 = vpack.c.b16 %v457, %v457
        %490 = vst [vmem:[%s197] sm:$0xf] %v458
        %491 = vst [vmem:[%s197 + $0x4] sm:$0xf] %v459
        %492 = vst [vmem:[%s197 + $0x8] sm:$0xf] %v460
        %493 = vst [vmem:[%s197 + $0xc] sm:$0xf] %v461
        %494 = vst [vmem:[%s197 + $0x10] sm:$0xf] %v462
        %495 = vst [vmem:[%s197 + $0x14] sm:$0xf] %v463
        %496 = vst [vmem:[%s197 + $0x18] sm:$0xf] %v464
        %497 = vst [vmem:[%s197 + $0x1c] sm:$0xf] %v465
        %498 = vst [vmem:[%s197 + $0x20] sm:$0xf] %v466
        %499 = vst [vmem:[%s197 + $0x24] sm:$0xf] %v467
        %500 = vst [vmem:[%s197 + $0x28] sm:$0xf] %v468
        %501 = vst [vmem:[%s197 + $0x2c] sm:$0xf] %v469
        %502 = vst [vmem:[%s197 + $0x30] sm:$0xf] %v470
        %503 = vst [vmem:[%s197 + $0x34] sm:$0xf] %v471
        %504 = vst [vmem:[%s197 + $0x38] sm:$0xf] %v472
        %505 = vst [vmem:[%s197 + $0x3c] sm:$0xf] %v473
        %s506 = sand.u32 %s94, 1
        %s507 = scalar_lea.sflag [#allocation4], %s506
        %s508 = sand.u32 %s94, 1
        %s509 = smul.addr %s508, 64
        %s510 = scalar_lea.vmem [#allocation7], %s509
        // Predicated region
        $region37: #{tpu_custom_call.1} parent=27 // pred_check
          %p511 = pneg %p104
        $region38: #{tpu_custom_call.1} parent=27 // pred_check_branch
          %513 = sbr.rel (%p511) target = $region40
        $region39: #{tpu_custom_call.1} parent=27 // pred_region
          %s514 = smul.u32 16, %s24
          %s516 = ssub.s32 1024, 1024
          %517 = vsyncadd %s507, %s516
          %s518 = sadd.s32 %s25, %s514
          %s519 = smul.addr %s518, 64
          %s520 = scalar_lea.hbm %s2, %s519
          %s521 = sshll.u32 %s510, 4
          %s522 = int_to_ptr.vmem [resolvable:$true] %s521
          %527 = dma.vmem_to_hbm [thread:$0]  %s522, 1024, %s520, %s507, 64, 64, 4
        $region40: #{tpu_custom_call.1} parent=27 // pred_fallthru
          _
      $region28: #{tpu_custom_call.1} parent=5 // pred_fallthru
        _
      %p528 = scmp.le.s32.totalorder 2, %s15
      // Predicated region
      $region41: #{tpu_custom_call.1} parent=5 // pred_check
        %p529 = pneg %p528
      $region42: #{tpu_custom_call.1} parent=5 // pred_check_branch
        %531 = sbr.rel (%p529) target = $region44
      $region43: #{tpu_custom_call.1} parent=5 // pred_region
        %s532 = ssub.s32 %s15, 2
        // Predicated region
        $region45: #{tpu_custom_call.1} parent=43 // pred_check
          %p533 = pneg %p110
        $region46: #{tpu_custom_call.1} parent=43 // pred_check_branch
          %535 = sbr.rel (%p533) target = $region48
        $region47: #{tpu_custom_call.1} parent=43 // pred_region
          %s536 = sand.u32 %s95, 1
          %s537 = scalar_lea.sflag [#allocation4], %s536
          %s538 = sand.u32 %s95, 1
          %s539 = smul.addr %s538, 64
          %s540 = scalar_lea.vmem [#allocation7], %s539
          %541 = dma.done %s537, 1024
        $region48: #{tpu_custom_call.1} parent=43 // pred_fallthru
          _
      $region44: #{tpu_custom_call.1} parent=5 // pred_fallthru
        _
    $region6: #{tpu_custom_call.1} parent=1 // loop_footer
      %s19 = sadd.s32 1, %s15
    $region7: #{tpu_custom_call.1} parent=1 // loop_footer_branch
      %14 = sbr.rel target = $region3
    $region8: #{tpu_custom_call.1} parent=1 // loop_exit
      _
    %542 = vsyncpa [#allocation3], 1
    %s543 = scalar_lea.sflag [#allocation3], 1
    %544 = vsyncpa %s543, 1
    %545 = vsyncpa [#allocation6], 1
    %546 = vsyncpa [#allocation4], 1
    %s547 = scalar_lea.sflag [#allocation4], 1
    %548 = vsyncpa %s547, 1

</llo_original>
